<compile_context>
chip_gen: v7x
topology: tpu7x:2x2x1
jax: 0.10.0
libtpu: 0.0.40
codegen_flags: <defaults>
</compile_context>

<pallas_src>
import functools

import jax
import jax.numpy as jnp
from jax.experimental import pallas as pl
from jax.experimental.pallas import tpu as pltpu


def _round_up(x: int, m: int) -> int:
    return (x + m - 1) // m * m


def _vmem_capacity_bytes() -> int:
    """Physical VMEM per TensorCore; conservative fallback if query fails."""
    try:
        return int(pltpu.get_tpu_info().vmem_capacity_bytes)
    except Exception:
        return 64 << 20  # v7x per-TC VMEM; safe lower bound everywhere


# ---------------------------------------------------------------------------
# Kernels
# ---------------------------------------------------------------------------
def _make_resident_kernel(num_linear: int):
    """Fully fused MLP: all weights VMEM-resident, row tiles over a 1-D grid."""

    def kernel(*refs):
        # refs = (x, w0, b0, w1, b1, ..., o)
        x_ref, o_ref = refs[0], refs[-1]
        p = refs[1:-1]

        h = x_ref[...].astype(jnp.bfloat16)              # cast in-kernel
        for l in range(num_linear):
            w = p[2 * l][...]                            # bf16, lane-dense
            b = p[2 * l + 1][...]                        # f32 (1, N)
            acc = jnp.dot(h, w, preferred_element_type=jnp.float32) + b
            if l < num_linear - 1:
                # bias-add / ReLU in f32 on the VPU; cast only at dot boundary.
                h = jnp.maximum(acc, 0.0).astype(jnp.bfloat16)
            else:
                o_ref[...] = acc.astype(o_ref.dtype)

    return kernel


def _stream_kernel(x_ref, w_in_ref, b_in_ref, w_hid_ref, b_hid_ref,
                   w_out_ref, b_out_ref, o_ref, h_ref):
    """Hidden-layer weights streamed over grid axis 1 (BlockSpec-pipelined);
    activation carried in VMEM scratch. in/out weights stay VMEM-resident."""
    l = pl.program_id(1)

    @pl.when(l == 0)
    def _():
        x = x_ref[...].astype(jnp.bfloat16)
        acc = jnp.dot(x, w_in_ref[...], preferred_element_type=jnp.float32)
        h_ref[...] = jnp.maximum(acc + b_in_ref[...], 0.0).astype(jnp.bfloat16)

    acc = jnp.dot(h_ref[...], w_hid_ref[0], preferred_element_type=jnp.float32)
    h_ref[...] = jnp.maximum(acc + b_hid_ref[0], 0.0).astype(jnp.bfloat16)

    @pl.when(l == pl.num_programs(1) - 1)
    def _():
        acc = jnp.dot(h_ref[...], w_out_ref[...], preferred_element_type=jnp.float32)
        o_ref[...] = (acc + b_out_ref[...]).astype(o_ref.dtype)


# ---------------------------------------------------------------------------
# Wrapper
# ---------------------------------------------------------------------------
def prepare_relu_net_params(params, hidden_layers: int, *, mode: str = "auto"):
    """Pad/cast weights ONCE (hoisted out of the jitted forward path).

    Returns (tree, meta). `tree` is a pytree of device arrays passed to the
    jitted forward; `meta` is static layout info (bind it via functools.partial).
    """
    n_lin = hidden_layers + 2
    Fin, H = params[0].shape
    Fout = params[-1].shape[-1]
    Fin_p, H_p, Fout_p = (_round_up(d, 128) for d in (Fin, H, Fout))
    dims = [(Fin_p, H_p)] + [(H_p, H_p)] * hidden_layers + [(H_p, Fout_p)]

    pw, pb = [], []
    for l in range(n_lin):
        w, b = params[2 * l], params[2 * l + 1]
        pr, pc = dims[l]
        pw.append(jnp.pad(w, ((0, pr - w.shape[0]), (0, pc - w.shape[1])))
                  .astype(jnp.bfloat16))
        pb.append(jnp.pad(b, ((0, 0), (0, pc - b.shape[1]))).astype(jnp.float32))

    param_bytes = sum(int(a.size) * a.dtype.itemsize for a in pw + pb)
    cap = _vmem_capacity_bytes()
    if mode == "auto":
        # Stream hidden layers once residency would eat ~half of VMEM
        # (leaves room for I/O double-buffers, f32 accumulators, scratch).
        mode = ("stream"
                if hidden_layers >= 1 and param_bytes > int(0.45 * cap)
                else "resident")

    if mode == "stream" and hidden_layers >= 1:
        tree = (pw[0], pb[0],
                jnp.stack(pw[1:1 + hidden_layers]),   # (L, H_p, H_p) bf16
                jnp.stack(pb[1:1 + hidden_layers]),   # (L, 1,  H_p) f32
                pw[-1], pb[-1])
    else:
        mode = "resident"
        tree = tuple(a for wb in zip(pw, pb) for a in wb)

    meta = dict(mode=mode, hidden_layers=hidden_layers,
                Fin=Fin, H=H, Fout=Fout,
                Fin_p=Fin_p, H_p=H_p, Fout_p=Fout_p,
                param_bytes=param_bytes)
    return tree, meta


def relu_net_forward(x, prepared, *, meta, out_dtype=jnp.float32):
    """x: (batch, seq, in_features) f32 -> (batch, seq, out_features)."""
    mode = meta["mode"]
    hidden_layers = meta["hidden_layers"]
    Fin, H, Fout = meta["Fin"], meta["H"], meta["Fout"]
    Fin_p, H_p, Fout_p = meta["Fin_p"], meta["H_p"], meta["Fout_p"]
    B, S, _ = x.shape
    rows = B * S

    cap = _vmem_capacity_bytes()
    cap_limit = min(int(cap * 7 // 8), 100 << 20)   # ~56 MiB on 64 MiB parts

    # Row tile: 16-aligned (bf16 sublane packing); bigger tiles on 128 MiB parts.
    tm_max = 512 if cap >= (100 << 20) else 256
    TM = min(tm_max, _round_up(rows, 16))
    rows_p = _round_up(rows, TM)

    out_itemsize = jnp.dtype(out_dtype).itemsize

    # x: avoid a padded HBM copy when feature/row dims already line up
    # (kernel casts to bf16 before the first dot).
    x2 = x.reshape(rows, Fin)
    if not (Fin == Fin_p and rows == rows_p):
        x2 = jnp.pad(x2, ((0, rows_p - rows), (0, Fin_p - Fin))).astype(jnp.bfloat16)
    x_item = x2.dtype.itemsize

    if mode == "resident":
        n_lin = hidden_layers + 2
        # NOTE: if a tiny-H config ends up x/out-DMA-bound, the x spec could add
        # pipeline_mode=pl.Buffered(3); weights deliberately stay single-copy.
        in_specs = [pl.BlockSpec((TM, Fin_p), lambda i: (i, 0))]
        # Whole-array VMEM residency for weights/biases: single copy, not
        # double-buffered by the row pipeline.
        in_specs += [pl.BlockSpec(memory_space=pltpu.MemorySpace.VMEM)
                     for _ in range(2 * n_lin)]
        out_spec = pl.BlockSpec((TM, Fout_p), lambda i: (i, 0))
        grid = (rows_p // TM,)
        dim_sem = ("parallel",)
        kernel = _make_resident_kernel(n_lin)
        operands = (x2, *prepared)
        scratch = ()
        need = (meta["param_bytes"]
                + 2 * TM * Fin_p * x_item
                + 2 * TM * Fout_p * out_itemsize
                + 3 * TM * max(Fin_p, H_p, Fout_p) * 4)
        w_hbm_bytes = meta["param_bytes"]
    else:
        w_in, b_in, w_hid, b_hid, w_out, b_out = prepared
        L = hidden_layers
        in_specs = [
            pl.BlockSpec((TM, Fin_p), lambda i, l: (i, 0)),
            pl.BlockSpec(memory_space=pltpu.MemorySpace.VMEM),    # w_in  (resident)
            pl.BlockSpec(memory_space=pltpu.MemorySpace.VMEM),    # b_in  (resident)
            pl.BlockSpec((1, H_p, H_p), lambda i, l: (l, 0, 0)),  # hidden W (streamed)
            pl.BlockSpec((1, 1, H_p), lambda i, l: (l, 0, 0)),    # hidden b (streamed)
            pl.BlockSpec(memory_space=pltpu.MemorySpace.VMEM),    # w_out (resident)
            pl.BlockSpec(memory_space=pltpu.MemorySpace.VMEM),    # b_out (resident)
        ]
        out_spec = pl.BlockSpec((TM, Fout_p), lambda i, l: (i, 0))
        grid = (rows_p // TM, L)
        dim_sem = ("parallel", "arbitrary")
        kernel = _stream_kernel
        operands = (x2, w_in, b_in, w_hid, b_hid, w_out, b_out)
        scratch = (pltpu.VMEM((TM, H_p), jnp.bfloat16),)          # carried activation
        resident_bytes = (w_in.size * w_in.dtype.itemsize
                          + b_in.size * b_in.dtype.itemsize
                          + w_out.size * w_out.dtype.itemsize
                          + b_out.size * b_out.dtype.itemsize)
        need = (resident_bytes
                + 2 * (H_p * H_p * 2 + H_p * 4)                   # streamed double-buffers
                + 2 * TM * Fin_p * x_item
                + 2 * TM * Fout_p * out_itemsize
                + TM * H_p * 2                                    # scratch h
                + 3 * TM * max(Fin_p, H_p, Fout_p) * 4)
        # hidden weights are re-streamed once per row tile
        w_hbm_bytes = resident_bytes + (rows_p // TM) * (
            w_hid.size * w_hid.dtype.itemsize + b_hid.size * b_hid.dtype.itemsize)

    vmem_limit = int(min(max(int(need * 1.25), 32 << 20), cap_limit))

    flops = 2 * rows * (Fin * H + hidden_layers * H * H + H * Fout)
    bytes_accessed = (rows_p * Fin_p * x_item + w_hbm_bytes
                      + rows_p * Fout_p * out_itemsize)
    cost = pl.CostEstimate(flops=int(flops), transcendentals=0,
                           bytes_accessed=int(bytes_accessed))

    out2 = pl.pallas_call(
        kernel,
        out_shape=jax.ShapeDtypeStruct((rows_p, Fout_p), out_dtype),
        grid=grid,
        in_specs=in_specs,
        out_specs=out_spec,
        scratch_shapes=scratch,
        compiler_params=pltpu.CompilerParams(
            dimension_semantics=dim_sem,
            vmem_limit_bytes=vmem_limit,
        ),
        cost_estimate=cost,
    )(*operands)

    return out2[:rows, :Fout].reshape(B, S, Fout)


# ---------------------------------------------------------------------------
# Init + references
# ---------------------------------------------------------------------------
def init_relu_net_params(key, hidden_layers, hidden_units, in_features, out_features):
    """Deterministic init mimicking nn.Linear default: U(-1/sqrt(fan_in), 1/sqrt(fan_in)).
    Weights stored as (fan_in, fan_out) (already transposed vs PyTorch)."""
    params = []

    def linear(key, fan_in, fan_out):
        kw, kb = jax.random.split(key)
        bound = 1.0 / jnp.sqrt(fan_in)
        w = jax.random.uniform(kw, (fan_in, fan_out), jnp.float32, -bound, bound)
        b = jax.random.uniform(kb, (1, fan_out), jnp.float32, -bound, bound)
        return w, b

    keys = jax.random.split(key, hidden_layers + 2)
    w, b = linear(keys[0], in_features, hidden_units)
    params += [w, b]
    for i in range(hidden_layers):
        w, b = linear(keys[1 + i], hidden_units, hidden_units)
        params += [w, b]
    w, b = linear(keys[-1], hidden_units, out_features)
    params += [w, b]
    return params


def relu_net_reference_f32(x, params, hidden_layers):
    """Pure-f32 JAX reference (matches the PyTorch module math)."""
    h = jnp.maximum(x @ params[0] + params[1], 0.0)
    idx = 2
    for _ in range(hidden_layers):
        h = jnp.maximum(h @ params[idx] + params[idx + 1], 0.0)
        idx += 2
    return h @ params[idx] + params[idx + 1]


def relu_net_reference_bf16(x, params, hidden_layers):
    """Reference mimicking the kernel's bf16-matmul / f32-accumulate math."""
    n_lin = hidden_layers + 2
    h = x
    for l in range(n_lin):
        w, b = params[2 * l], params[2 * l + 1]
        acc = jnp.dot(h.astype(jnp.bfloat16), w.astype(jnp.bfloat16),
                      preferred_element_type=jnp.float32) + b
        h = jnp.maximum(acc, 0.0) if l < n_lin - 1 else acc
    return h


if __name__ == "__main__":
    # Small shapes consistent with forward(): (batch, seq, in_features)
    batch, seq = 2, 8
    hidden_layers, hidden_units = 2, 32
    in_features, out_features = 16, 8

    key = jax.random.PRNGKey(0)
    kx, kp = jax.random.split(key)
    x = jax.random.normal(kx, (batch, seq, in_features), jnp.float32)
    params = init_relu_net_params(kp, hidden_layers, hidden_units,
                                  in_features, out_features)

    ref_bf16 = relu_net_reference_bf16(x, params, hidden_layers)
    ref_f32 = relu_net_reference_f32(x, params, hidden_layers)

    # Resident path: prepare (pad/cast) weights ONCE, jit only the forward.
    prepared, meta = prepare_relu_net_params(params, hidden_layers)
    fwd = jax.jit(functools.partial(relu_net_forward, meta=meta))
    out = jax.block_until_ready(fwd(x, prepared))
    assert out.shape == (batch, seq, out_features)
    assert jnp.allclose(out, ref_bf16, atol=2e-3, rtol=2e-3), "resident: mismatch vs bf16 ref"
    assert jnp.allclose(out, ref_f32, atol=5e-2, rtol=5e-2), "resident: mismatch vs f32 ref"

    # Streamed-hidden-layer path (auto-selected when padded weights would not
    # comfortably fit VMEM, e.g. large H on v7x) - exercised here at small
    # shapes to validate it end-to-end.
    prepared_s, meta_s = prepare_relu_net_params(params, hidden_layers, mode="stream")
    fwd_s = jax.jit(functools.partial(relu_net_forward, meta=meta_s))
    out_s = jax.block_until_ready(fwd_s(x, prepared_s))
    assert out_s.shape == (batch, seq, out_features)
    assert jnp.allclose(out_s, ref_bf16, atol=2e-3, rtol=2e-3), "stream: mismatch vs bf16 ref"
    assert jnp.allclose(out_s, ref_f32, atol=5e-2, rtol=5e-2), "stream: mismatch vs f32 ref"

    print("KERNEL_OK")
</pallas_src>

<mosaic_0001>
module attributes {stable_mosaic.version = 11 : i64} {
  func.func @kernel(%arg0: i32, %arg1: memref<16x128xbf16, #tpu.memory_space<vmem>>, %arg2: memref<128x128xbf16, #tpu.memory_space<vmem>>, %arg3: memref<1x128xf32, #tpu.memory_space<vmem>>, %arg4: memref<128x128xbf16, #tpu.memory_space<vmem>>, %arg5: memref<1x128xf32, #tpu.memory_space<vmem>>, %arg6: memref<128x128xbf16, #tpu.memory_space<vmem>>, %arg7: memref<1x128xf32, #tpu.memory_space<vmem>>, %arg8: memref<128x128xbf16, #tpu.memory_space<vmem>>, %arg9: memref<1x128xf32, #tpu.memory_space<vmem>>, %arg10: memref<16x128xf32, #tpu.memory_space<vmem>>) attributes {dimension_semantics = [#tpu.dimension_semantics<parallel>], iteration_bounds = array<i64: 1>, scalar_prefetch = 0 : i64, scratch_operands = 0 : i64, tpu.core_type = #tpu.core_type<tc>, window_params = [{transform_indices = @transform_0, window_bounds = array<i64: 16, 128>}, {pipeline_mode = #tpu.pipeline_mode<synchronous>, transform_indices = @transform_1, window_bounds = array<i64: 128, 128>}, {pipeline_mode = #tpu.pipeline_mode<synchronous>, transform_indices = @transform_2, window_bounds = array<i64: 1, 128>}, {pipeline_mode = #tpu.pipeline_mode<synchronous>, transform_indices = @transform_3, window_bounds = array<i64: 128, 128>}, {pipeline_mode = #tpu.pipeline_mode<synchronous>, transform_indices = @transform_4, window_bounds = array<i64: 1, 128>}, {pipeline_mode = #tpu.pipeline_mode<synchronous>, transform_indices = @transform_5, window_bounds = array<i64: 128, 128>}, {pipeline_mode = #tpu.pipeline_mode<synchronous>, transform_indices = @transform_6, window_bounds = array<i64: 1, 128>}, {pipeline_mode = #tpu.pipeline_mode<synchronous>, transform_indices = @transform_7, window_bounds = array<i64: 128, 128>}, {pipeline_mode = #tpu.pipeline_mode<synchronous>, transform_indices = @transform_8, window_bounds = array<i64: 1, 128>}, {transform_indices = @transform_9, window_bounds = array<i64: 16, 128>}]} {
    %c0 = arith.constant 0 : index
    %c0_0 = arith.constant 0 : index
    %0 = vector.load %arg1[%c0, %c0_0] : memref<16x128xbf16, #tpu.memory_space<vmem>>, vector<16x128xbf16>
    %c0_1 = arith.constant 0 : index
    %c0_2 = arith.constant 0 : index
    %1 = vector.load %arg2[%c0_1, %c0_2] : memref<128x128xbf16, #tpu.memory_space<vmem>>, vector<128x128xbf16>
    %c0_3 = arith.constant 0 : index
    %c0_4 = arith.constant 0 : index
    %2 = vector.load %arg3[%c0_3, %c0_4] : memref<1x128xf32, #tpu.memory_space<vmem>>, vector<1x128xf32>
    %cst = arith.constant dense<0.000000e+00> : vector<16x128xf32>
    %3 = tpu.matmul %0, %1, %cst {dimension_numbers = #tpu.dot_dimension_numbers<[1], [0], [0], [1], [0, 0, 1, 1], [], []>} : vector<16x128xbf16>, vector<128x128xbf16>, vector<16x128xf32> -> vector<16x128xf32>
    %4 = vector.broadcast %2 : vector<1x128xf32> to vector<16x128xf32>
    %5 = arith.addf %3, %4 : vector<16x128xf32>
    %cst_5 = arith.constant 0.000000e+00 : f32
    %6 = vector.broadcast %cst_5 : f32 to vector<16x128xf32>
    %7 = arith.maximumf %5, %6 : vector<16x128xf32>
    %8 = arith.truncf %7 : vector<16x128xf32> to vector<16x128xbf16>
    %c0_6 = arith.constant 0 : index
    %c0_7 = arith.constant 0 : index
    %9 = vector.load %arg4[%c0_6, %c0_7] : memref<128x128xbf16, #tpu.memory_space<vmem>>, vector<128x128xbf16>
    %c0_8 = arith.constant 0 : index
    %c0_9 = arith.constant 0 : index
    %10 = vector.load %arg5[%c0_8, %c0_9] : memref<1x128xf32, #tpu.memory_space<vmem>>, vector<1x128xf32>
    %cst_10 = arith.constant dense<0.000000e+00> : vector<16x128xf32>
    %11 = tpu.matmul %8, %9, %cst_10 {dimension_numbers = #tpu.dot_dimension_numbers<[1], [0], [0], [1], [0, 0, 1, 1], [], []>} : vector<16x128xbf16>, vector<128x128xbf16>, vector<16x128xf32> -> vector<16x128xf32>
    %12 = vector.broadcast %10 : vector<1x128xf32> to vector<16x128xf32>
    %13 = arith.addf %11, %12 : vector<16x128xf32>
    %cst_11 = arith.constant 0.000000e+00 : f32
    %14 = vector.broadcast %cst_11 : f32 to vector<16x128xf32>
    %15 = arith.maximumf %13, %14 : vector<16x128xf32>
    %16 = arith.truncf %15 : vector<16x128xf32> to vector<16x128xbf16>
    %c0_12 = arith.constant 0 : index
    %c0_13 = arith.constant 0 : index
    %17 = vector.load %arg6[%c0_12, %c0_13] : memref<128x128xbf16, #tpu.memory_space<vmem>>, vector<128x128xbf16>
    %c0_14 = arith.constant 0 : index
    %c0_15 = arith.constant 0 : index
    %18 = vector.load %arg7[%c0_14, %c0_15] : memref<1x128xf32, #tpu.memory_space<vmem>>, vector<1x128xf32>
    %cst_16 = arith.constant dense<0.000000e+00> : vector<16x128xf32>
    %19 = tpu.matmul %16, %17, %cst_16 {dimension_numbers = #tpu.dot_dimension_numbers<[1], [0], [0], [1], [0, 0, 1, 1], [], []>} : vector<16x128xbf16>, vector<128x128xbf16>, vector<16x128xf32> -> vector<16x128xf32>
    %20 = vector.broadcast %18 : vector<1x128xf32> to vector<16x128xf32>
    %21 = arith.addf %19, %20 : vector<16x128xf32>
    %cst_17 = arith.constant 0.000000e+00 : f32
    %22 = vector.broadcast %cst_17 : f32 to vector<16x128xf32>
    %23 = arith.maximumf %21, %22 : vector<16x128xf32>
    %24 = arith.truncf %23 : vector<16x128xf32> to vector<16x128xbf16>
    %c0_18 = arith.constant 0 : index
    %c0_19 = arith.constant 0 : index
    %25 = vector.load %arg8[%c0_18, %c0_19] : memref<128x128xbf16, #tpu.memory_space<vmem>>, vector<128x128xbf16>
    %c0_20 = arith.constant 0 : index
    %c0_21 = arith.constant 0 : index
    %26 = vector.load %arg9[%c0_20, %c0_21] : memref<1x128xf32, #tpu.memory_space<vmem>>, vector<1x128xf32>
    %cst_22 = arith.constant dense<0.000000e+00> : vector<16x128xf32>
    %27 = tpu.matmul %24, %25, %cst_22 {dimension_numbers = #tpu.dot_dimension_numbers<[1], [0], [0], [1], [0, 0, 1, 1], [], []>} : vector<16x128xbf16>, vector<128x128xbf16>, vector<16x128xf32> -> vector<16x128xf32>
    %28 = vector.broadcast %26 : vector<1x128xf32> to vector<16x128xf32>
    %29 = arith.addf %27, %28 : vector<16x128xf32>
    %c0_23 = arith.constant 0 : index
    %c0_24 = arith.constant 0 : index
    %30 = vector.load %arg10[%c0_23, %c0_24] : memref<16x128xf32, #tpu.memory_space<vmem>>, vector<16x128xf32>
    tpu.vector_store %arg10[%c0_23, %c0_24], %29 {strides = array<i32>} : memref<16x128xf32, #tpu.memory_space<vmem>>, vector<16x128xf32>,
    return
  }
  func.func @transform_0(%arg0: i32) -> (i32, i32) {
    %c0_i32 = arith.constant 0 : i32
    %c0_i32_0 = arith.constant 0 : i32
    return %arg0, %c0_i32 : i32, i32
  }
  func.func @transform_1(%arg0: i32) -> (i32, i32) {
    %c0_i32 = arith.constant 0 : i32
    %c0_i32_0 = arith.constant 0 : i32
    %c0_i32_1 = arith.constant 0 : i32
    return %c0_i32, %c0_i32_0 : i32, i32
  }
  func.func @transform_2(%arg0: i32) -> (i32, i32) {
    %c0_i32 = arith.constant 0 : i32
    %c0_i32_0 = arith.constant 0 : i32
    %c0_i32_1 = arith.constant 0 : i32
    return %c0_i32, %c0_i32_0 : i32, i32
  }
  func.func @transform_3(%arg0: i32) -> (i32, i32) {
    %c0_i32 = arith.constant 0 : i32
    %c0_i32_0 = arith.constant 0 : i32
    %c0_i32_1 = arith.constant 0 : i32
    return %c0_i32, %c0_i32_0 : i32, i32
  }
  func.func @transform_4(%arg0: i32) -> (i32, i32) {
    %c0_i32 = arith.constant 0 : i32
    %c0_i32_0 = arith.constant 0 : i32
    %c0_i32_1 = arith.constant 0 : i32
    return %c0_i32, %c0_i32_0 : i32, i32
  }
  func.func @transform_5(%arg0: i32) -> (i32, i32) {
    %c0_i32 = arith.constant 0 : i32
    %c0_i32_0 = arith.constant 0 : i32
    %c0_i32_1 = arith.constant 0 : i32
    return %c0_i32, %c0_i32_0 : i32, i32
  }
  func.func @transform_6(%arg0: i32) -> (i32, i32) {
    %c0_i32 = arith.constant 0 : i32
    %c0_i32_0 = arith.constant 0 : i32
    %c0_i32_1 = arith.constant 0 : i32
    return %c0_i32, %c0_i32_0 : i32, i32
  }
  func.func @transform_7(%arg0: i32) -> (i32, i32) {
    %c0_i32 = arith.constant 0 : i32
    %c0_i32_0 = arith.constant 0 : i32
    %c0_i32_1 = arith.constant 0 : i32
    return %c0_i32, %c0_i32_0 : i32, i32
  }
  func.func @transform_8(%arg0: i32) -> (i32, i32) {
    %c0_i32 = arith.constant 0 : i32
    %c0_i32_0 = arith.constant 0 : i32
    %c0_i32_1 = arith.constant 0 : i32
    return %c0_i32, %c0_i32_0 : i32, i32
  }
  func.func @transform_9(%arg0: i32) -> (i32, i32) {
    %c0_i32 = arith.constant 0 : i32
    %c0_i32_0 = arith.constant 0 : i32
    return %arg0, %c0_i32 : i32, i32
  }
}

</mosaic_0001>

<llo_original>
// kernel: relu_net_forward.1
$region0: #{relu_net_forward.1}
  #allocation0 [shape = 'u32[]', space=smem, size = 0x4, offset = 0x4, fixed_abs, tag = 'smem constant byte address 0x4 - core index']
  #allocation1 [shape = 'u32[144,128]{1,0:T(1,128)}', space=vmem, size = 0x12000, scoped, tag = 'internal scratch']
  %s0 = inlined_call_operand.vmem [shape: bf16[16,128], index: 0, kind: input, shape index: {}]
  %s1 = inlined_call_operand.hbm [shape: bf16[128,128], index: 1, kind: input, shape index: {}]
  %s2 = inlined_call_operand.vmem [shape: f32[1,128], index: 2, kind: input, shape index: {}]
  %s3 = inlined_call_operand.hbm [shape: bf16[128,128], index: 3, kind: input, shape index: {}]
  %s4 = inlined_call_operand.vmem [shape: f32[1,128], index: 4, kind: input, shape index: {}]
  %s5 = inlined_call_operand.hbm [shape: bf16[128,128], index: 5, kind: input, shape index: {}]
  %s6 = inlined_call_operand.vmem [shape: f32[1,128], index: 6, kind: input, shape index: {}]
  %s7 = inlined_call_operand.vmem [shape: bf16[128,128], index: 7, kind: input, shape index: {}]
  %s8 = inlined_call_operand.vmem [shape: f32[1,128], index: 8, kind: input, shape index: {}]
  %s9 = inlined_call_operand.vmem [shape: f32[16,128], index: 9, kind: output, shape index: {}]
  %s10 = sld [smem:[#allocation0]]
  $region58: #{relu_net_forward.1} parent=0
    _
  %s12 = ssub.s32 1, %s10
  %s13 = scalar_select 0, %s12, %s10
  $region1: #{relu_net_forward.1} parent=0
    #allocation2 [shape = 'u8[32768]{0}', space=vmem, size = 0x8000, scoped, tag = 'input window, operand 1, single buffered']
    #allocation3 [shape = 's32[1]{0}', space=sflag, size = 0x4, scoped, tag = 'scoped memory for relu_net_forward.1']
    #allocation4 [shape = 'u8[32768]{0}', space=vmem, size = 0x8000, scoped, tag = 'input window, operand 3, single buffered']
    #allocation5 [shape = 's32[1]{0}', space=sflag, size = 0x4, scoped, tag = 'scoped memory for relu_net_forward.1']
    #allocation6 [shape = 'u8[32768]{0}', space=vmem, size = 0x8000, scoped, tag = 'input window, operand 5, single buffered']
    %14 = vsyncpa [#allocation3], 0
    %15 = vsyncpa [#allocation5], 0
    // Predicated region
    $region2: #{relu_net_forward.1} parent=1 // pred_check
      _
    $region3: #{relu_net_forward.1} parent=1 // pred_check_branch
      %17 = sbr.rel (0) target = $region5
    $region4: #{relu_net_forward.1} parent=1 // pred_region
      _
    $region5: #{relu_net_forward.1} parent=1 // pred_fallthru
      _
    // Predicated region
    $region6: #{relu_net_forward.1} parent=1 // pred_check
      _
    $region7: #{relu_net_forward.1} parent=1 // pred_check_branch
      %19 = sbr.rel (0) target = $region9
    $region8: #{relu_net_forward.1} parent=1 // pred_region
      %s21 = ssub.s32 1024, 1024
      %22 = vsyncadd [#allocation3], %s21
      %s23 = sshll.u32 [#allocation2], 4
      %s24 = int_to_ptr.vmem [resolvable:$true] %s23
      %29 = dma.hbm_to_vmem [thread:$0]  %s1, 1024, %s24, [#allocation3], 64, 64, 4
    $region9: #{relu_net_forward.1} parent=1 // pred_fallthru
      _
    // Predicated region
    $region10: #{relu_net_forward.1} parent=1 // pred_check
      _
    $region11: #{relu_net_forward.1} parent=1 // pred_check_branch
      %31 = sbr.rel (0) target = $region13
    $region12: #{relu_net_forward.1} parent=1 // pred_region
      _
    $region13: #{relu_net_forward.1} parent=1 // pred_fallthru
      _
    // Predicated region
    $region14: #{relu_net_forward.1} parent=1 // pred_check
      _
    $region15: #{relu_net_forward.1} parent=1 // pred_check_branch
      %33 = sbr.rel (0) target = $region17
    $region16: #{relu_net_forward.1} parent=1 // pred_region
      %s35 = ssub.s32 1024, 1024
      %36 = vsyncadd [#allocation5], %s35
      %s37 = sshll.u32 [#allocation4], 4
      %s38 = int_to_ptr.vmem [resolvable:$true] %s37
      %43 = dma.hbm_to_vmem [thread:$0]  %s3, 1024, %s38, [#allocation5], 64, 64, 4
    $region17: #{relu_net_forward.1} parent=1 // pred_fallthru
      _
    // Predicated region
    $region18: #{relu_net_forward.1} parent=1 // pred_check
      _
    $region19: #{relu_net_forward.1} parent=1 // pred_check_branch
      %45 = sbr.rel (0) target = $region21
    $region20: #{relu_net_forward.1} parent=1 // pred_region
      _
    $region21: #{relu_net_forward.1} parent=1 // pred_fallthru
      _
    // Predicated region
    $region22: #{relu_net_forward.1} parent=1 // pred_check
      _
    $region23: #{relu_net_forward.1} parent=1 // pred_check_branch
      %47 = sbr.rel (0) target = $region25
    $region24: #{relu_net_forward.1} parent=1 // pred_region
      %s49 = ssub.s32 1024, 1024
      %50 = vsyncadd [#allocation5], %s49
      %s51 = sshll.u32 [#allocation6], 4
      %s52 = int_to_ptr.vmem [resolvable:$true] %s51
      %57 = dma.hbm_to_vmem [thread:$0]  %s5, 1024, %s52, [#allocation5], 64, 64, 4
    $region25: #{relu_net_forward.1} parent=1 // pred_fallthru
      _
    // Predicated region
    $region26: #{relu_net_forward.1} parent=1 // pred_check
      _
    $region27: #{relu_net_forward.1} parent=1 // pred_check_branch
      %59 = sbr.rel (0) target = $region29
    $region28: #{relu_net_forward.1} parent=1 // pred_region
      _
    $region29: #{relu_net_forward.1} parent=1 // pred_fallthru
      _
    // Predicated region
    $region30: #{relu_net_forward.1} parent=1 // pred_check
      _
    $region31: #{relu_net_forward.1} parent=1 // pred_check_branch
      %61 = sbr.rel (0) target = $region33
    $region32: #{relu_net_forward.1} parent=1 // pred_region
      _
    $region33: #{relu_net_forward.1} parent=1 // pred_fallthru
      _
    // Predicated region
    $region34: #{relu_net_forward.1} parent=1 // pred_check
      _
    $region35: #{relu_net_forward.1} parent=1 // pred_check_branch
      %63 = sbr.rel (0) target = $region37
    $region36: #{relu_net_forward.1} parent=1 // pred_region
      _
    $region37: #{relu_net_forward.1} parent=1 // pred_fallthru
      _
    // Predicated region
    $region38: #{relu_net_forward.1} parent=1 // pred_check
      _
    $region39: #{relu_net_forward.1} parent=1 // pred_check_branch
      %65 = sbr.rel (0) target = $region41
    $region40: #{relu_net_forward.1} parent=1 // pred_region
      %66 = dma.done [#allocation3], 1024
    $region41: #{relu_net_forward.1} parent=1 // pred_fallthru
      _
    // Predicated region
    $region42: #{relu_net_forward.1} parent=1 // pred_check
      _
    $region43: #{relu_net_forward.1} parent=1 // pred_check_branch
      %68 = sbr.rel (0) target = $region45
    $region44: #{relu_net_forward.1} parent=1 // pred_region
      %69 = dma.done [#allocation5], 1024
    $region45: #{relu_net_forward.1} parent=1 // pred_fallthru
      _
    // Predicated region
    $region46: #{relu_net_forward.1} parent=1 // pred_check
      _
    $region47: #{relu_net_forward.1} parent=1 // pred_check_branch
      %71 = sbr.rel (0) target = $region49
    $region48: #{relu_net_forward.1} parent=1 // pred_region
      %72 = dma.done [#allocation5], 1024
    $region49: #{relu_net_forward.1} parent=1 // pred_fallthru
      _
    %v74 = vld [vmem:[%s0] sm:$0xf]
    %v75 = vld [vmem:[%s0 + $0x4] sm:$0xf]
    %v76 = vld [vmem:[#allocation2] sm:$0xf]
    %v77 = vld [vmem:[#allocation2 + $0x4] sm:$0xf]
    %v78 = vld [vmem:[#allocation2 + $0x8] sm:$0xf]
    %v79 = vld [vmem:[#allocation2 + $0xc] sm:$0xf]
    %v80 = vld [vmem:[#allocation2 + $0x10] sm:$0xf]
    %v81 = vld [vmem:[#allocation2 + $0x14] sm:$0xf]
    %v82 = vld [vmem:[#allocation2 + $0x18] sm:$0xf]
    %v83 = vld [vmem:[#allocation2 + $0x1c] sm:$0xf]
    %v84 = vld [vmem:[#allocation2 + $0x20] sm:$0xf]
    %v85 = vld [vmem:[#allocation2 + $0x24] sm:$0xf]
    %v86 = vld [vmem:[#allocation2 + $0x28] sm:$0xf]
    %v87 = vld [vmem:[#allocation2 + $0x2c] sm:$0xf]
    %v88 = vld [vmem:[#allocation2 + $0x30] sm:$0xf]
    %v89 = vld [vmem:[#allocation2 + $0x34] sm:$0xf]
    %v90 = vld [vmem:[#allocation2 + $0x38] sm:$0xf]
    %v91 = vld [vmem:[#allocation2 + $0x3c] sm:$0xf]
    %v92 = vld [vmem:[%s2] sm:$0x1]
    %v94 = vlaneseq
    %v95 = vshrl.u32 %v94, 7
    %v96 = vsub.s32 0, %v95
    %v97 = vrot.slane %v92, %v96
    %v101 = vunpack.c.l.b16 %v74
    %v102 = vunpack.c.l.b16 %v75
    %v103 = vpack.c.b16 %v102, %v101
    %v121 = vunpack.c.l.b16 %v76
    %v122 = vunpack.c.l.b16 %v77
    %v123 = vunpack.c.l.b16 %v78
    %v124 = vunpack.c.l.b16 %v79
    %v125 = vunpack.c.l.b16 %v80
    %v126 = vunpack.c.l.b16 %v81
    %v127 = vunpack.c.l.b16 %v82
    %v128 = vunpack.c.l.b16 %v83
    %v129 = vunpack.c.l.b16 %v84
    %v130 = vunpack.c.l.b16 %v85
    %v131 = vunpack.c.l.b16 %v86
    %v132 = vunpack.c.l.b16 %v87
    %v133 = vunpack.c.l.b16 %v88
    %v134 = vunpack.c.l.b16 %v89
    %v135 = vunpack.c.l.b16 %v90
    %v136 = vunpack.c.l.b16 %v91
    %v137 = vpack.c.b16 %v122, %v121
    %v138 = vpack.c.b16 %v124, %v123
    %v139 = vpack.c.b16 %v126, %v125
    %v140 = vpack.c.b16 %v128, %v127
    %v141 = vpack.c.b16 %v130, %v129
    %v142 = vpack.c.b16 %v132, %v131
    %v143 = vpack.c.b16 %v134, %v133
    %v144 = vpack.c.b16 %v136, %v135
    %153 = vmatprep.subr.bf16.mxu0 0
    %154 = vmatpush1.bf16.msra.mxu0 %v137
    %155 = vmatprep.subr.bf16.mxu0 0
    %156 = vmatpush1.bf16.msra.mxu0 %v138
    %157 = vmatprep.subr.bf16.mxu0 0
    %158 = vmatpush1.bf16.msra.mxu0 %v139
    %159 = vmatprep.subr.bf16.mxu0 0
    %160 = vmatpush1.bf16.msra.mxu0 %v140
    %161 = vmatprep.subr.bf16.mxu0 0
    %162 = vmatpush1.bf16.msra.mxu0 %v141
    %163 = vmatprep.subr.bf16.mxu0 0
    %164 = vmatpush1.bf16.msra.mxu0 %v142
    %165 = vmatprep.subr.bf16.mxu0 0
    %166 = vmatpush1.bf16.msra.mxu0 %v143
    %167 = vmatprep.subr.bf16.mxu0 0
    %168 = vmatpush1.bf16.msra.mxu0 %v144
    %169 = vmatprep.subr.bf16.mxu0 0
    %170 = vmatpush1.bf16.msra.mxu0 0
    %171 = vmatprep.subr.bf16.mxu0 0
    %172 = vmatpush1.bf16.msra.mxu0 0
    %173 = vmatprep.subr.bf16.mxu0 0
    %174 = vmatpush1.bf16.msra.mxu0 0
    %175 = vmatprep.subr.bf16.mxu0 0
    %176 = vmatpush1.bf16.msra.mxu0 0
    %177 = vmatprep.subr.bf16.mxu0 0
    %178 = vmatpush1.bf16.msra.mxu0 0
    %179 = vmatprep.subr.bf16.mxu0 0
    %180 = vmatpush1.bf16.msra.mxu0 0
    %181 = vmatprep.subr.bf16.mxu0 0
    %182 = vmatpush1.bf16.msra.mxu0 0
    %183 = vmatprep.subr.bf16.mxu0 0
    %184 = vmatpush1.bf16.msra.mxu0 0
    %185 = vmatprep.mubr.bf16.mxu0 0
    %186 = vmatmul.mubr.bf16.gmra.mrb[0].mxu0 %v103
    %v187 = vpop.f32.mrb[0].mxu0
    %v188 = vadd.f32 %v97, %v187
    %v189 = vpop.f32.mrb[0].mxu0
    %v190 = vpop.f32.mrb[0].mxu0
    %v191 = vadd.f32 %v97, %v190
    %v192 = vpop.f32.mrb[0].mxu0
    %193 = vdwg.mxu0
    %v194 = vmax.f32 %v188, 0.0
    %v195 = vmax.f32 %v191, 0.0
    %v196 = vpack.c.bf16 %v195, %v194
    %v197 = vld [vmem:[#allocation4] sm:$0xf]
    %v198 = vld [vmem:[#allocation4 + $0x4] sm:$0xf]
    %v199 = vld [vmem:[#allocation4 + $0x8] sm:$0xf]
    %v200 = vld [vmem:[#allocation4 + $0xc] sm:$0xf]
    %v201 = vld [vmem:[#allocation4 + $0x10] sm:$0xf]
    %v202 = vld [vmem:[#allocation4 + $0x14] sm:$0xf]
    %v203 = vld [vmem:[#allocation4 + $0x18] sm:$0xf]
    %v204 = vld [vmem:[#allocation4 + $0x1c] sm:$0xf]
    %v205 = vld [vmem:[#allocation4 + $0x20] sm:$0xf]
    %v206 = vld [vmem:[#allocation4 + $0x24] sm:$0xf]
    %v207 = vld [vmem:[#allocation4 + $0x28] sm:$0xf]
    %v208 = vld [vmem:[#allocation4 + $0x2c] sm:$0xf]
    %v209 = vld [vmem:[#allocation4 + $0x30] sm:$0xf]
    %v210 = vld [vmem:[#allocation4 + $0x34] sm:$0xf]
    %v211 = vld [vmem:[#allocation4 + $0x38] sm:$0xf]
    %v212 = vld [vmem:[#allocation4 + $0x3c] sm:$0xf]
    %v213 = vld [vmem:[%s4] sm:$0x1]
    %v215 = vlaneseq
    %v216 = vshrl.u32 %v215, 7
    %v217 = vsub.s32 0, %v216
    %v218 = vrot.slane %v213, %v217
    %v236 = vunpack.c.l.b16 %v197
    %v237 = vunpack.c.l.b16 %v198
    %v238 = vunpack.c.l.b16 %v199
    %v239 = vunpack.c.l.b16 %v200
    %v240 = vunpack.c.l.b16 %v201
    %v241 = vunpack.c.l.b16 %v202
    %v242 = vunpack.c.l.b16 %v203
    %v243 = vunpack.c.l.b16 %v204
    %v244 = vunpack.c.l.b16 %v205
    %v245 = vunpack.c.l.b16 %v206
    %v246 = vunpack.c.l.b16 %v207
    %v247 = vunpack.c.l.b16 %v208
    %v248 = vunpack.c.l.b16 %v209
    %v249 = vunpack.c.l.b16 %v210
    %v250 = vunpack.c.l.b16 %v211
    %v251 = vunpack.c.l.b16 %v212
    %v252 = vpack.c.b16 %v237, %v236
    %v253 = vpack.c.b16 %v239, %v238
    %v254 = vpack.c.b16 %v241, %v240
    %v255 = vpack.c.b16 %v243, %v242
    %v256 = vpack.c.b16 %v245, %v244
    %v257 = vpack.c.b16 %v247, %v246
    %v258 = vpack.c.b16 %v249, %v248
    %v259 = vpack.c.b16 %v251, %v250
    %268 = vmatprep.subr.bf16.mxu0 0
    %269 = vmatpush1.bf16.msra.mxu0 %v252
    %270 = vmatprep.subr.bf16.mxu0 0
    %271 = vmatpush1.bf16.msra.mxu0 %v253
    %272 = vmatprep.subr.bf16.mxu0 0
    %273 = vmatpush1.bf16.msra.mxu0 %v254
    %274 = vmatprep.subr.bf16.mxu0 0
    %275 = vmatpush1.bf16.msra.mxu0 %v255
    %276 = vmatprep.subr.bf16.mxu0 0
    %277 = vmatpush1.bf16.msra.mxu0 %v256
    %278 = vmatprep.subr.bf16.mxu0 0
    %279 = vmatpush1.bf16.msra.mxu0 %v257
    %280 = vmatprep.subr.bf16.mxu0 0
    %281 = vmatpush1.bf16.msra.mxu0 %v258
    %282 = vmatprep.subr.bf16.mxu0 0
    %283 = vmatpush1.bf16.msra.mxu0 %v259
    %284 = vmatprep.subr.bf16.mxu0 0
    %285 = vmatpush1.bf16.msra.mxu0 0
    %286 = vmatprep.subr.bf16.mxu0 0
    %287 = vmatpush1.bf16.msra.mxu0 0
    %288 = vmatprep.subr.bf16.mxu0 0
    %289 = vmatpush1.bf16.msra.mxu0 0
    %290 = vmatprep.subr.bf16.mxu0 0
    %291 = vmatpush1.bf16.msra.mxu0 0
    %292 = vmatprep.subr.bf16.mxu0 0
    %293 = vmatpush1.bf16.msra.mxu0 0
    %294 = vmatprep.subr.bf16.mxu0 0
    %295 = vmatpush1.bf16.msra.mxu0 0
    %296 = vmatprep.subr.bf16.mxu0 0
    %297 = vmatpush1.bf16.msra.mxu0 0
    %298 = vmatprep.subr.bf16.mxu0 0
    %299 = vmatpush1.bf16.msra.mxu0 0
    %300 = vmatprep.mubr.bf16.mxu0 0
    %301 = vmatmul.mubr.bf16.gmra.mrb[0].mxu0 %v196
    %v302 = vpop.f32.mrb[0].mxu0
    %v303 = vadd.f32 %v218, %v302
    %v304 = vpop.f32.mrb[0].mxu0
    %v305 = vpop.f32.mrb[0].mxu0
    %v306 = vadd.f32 %v218, %v305
    %v307 = vpop.f32.mrb[0].mxu0
    %308 = vdwg.mxu0
    %v309 = vmax.f32 %v303, 0.0
    %v310 = vmax.f32 %v306, 0.0
    %v311 = vpack.c.bf16 %v310, %v309
    %v312 = vld [vmem:[#allocation6] sm:$0xf]
    %v313 = vld [vmem:[#allocation6 + $0x4] sm:$0xf]
    %v314 = vld [vmem:[#allocation6 + $0x8] sm:$0xf]
    %v315 = vld [vmem:[#allocation6 + $0xc] sm:$0xf]
    %v316 = vld [vmem:[#allocation6 + $0x10] sm:$0xf]
    %v317 = vld [vmem:[#allocation6 + $0x14] sm:$0xf]
    %v318 = vld [vmem:[#allocation6 + $0x18] sm:$0xf]
    %v319 = vld [vmem:[#allocation6 + $0x1c] sm:$0xf]
    %v320 = vld [vmem:[#allocation6 + $0x20] sm:$0xf]
    %v321 = vld [vmem:[#allocation6 + $0x24] sm:$0xf]
    %v322 = vld [vmem:[#allocation6 + $0x28] sm:$0xf]
    %v323 = vld [vmem:[#allocation6 + $0x2c] sm:$0xf]
    %v324 = vld [vmem:[#allocation6 + $0x30] sm:$0xf]
    %v325 = vld [vmem:[#allocation6 + $0x34] sm:$0xf]
    %v326 = vld [vmem:[#allocation6 + $0x38] sm:$0xf]
    %v327 = vld [vmem:[#allocation6 + $0x3c] sm:$0xf]
    %v328 = vld [vmem:[%s6] sm:$0x1]
    %v330 = vlaneseq
    %v331 = vshrl.u32 %v330, 7
    %v332 = vsub.s32 0, %v331
    %v333 = vrot.slane %v328, %v332
    %v351 = vunpack.c.l.b16 %v312
    %v352 = vunpack.c.l.b16 %v313
    %v353 = vunpack.c.l.b16 %v314
    %v354 = vunpack.c.l.b16 %v315
    %v355 = vunpack.c.l.b16 %v316
    %v356 = vunpack.c.l.b16 %v317
    %v357 = vunpack.c.l.b16 %v318
    %v358 = vunpack.c.l.b16 %v319
    %v359 = vunpack.c.l.b16 %v320
    %v360 = vunpack.c.l.b16 %v321
    %v361 = vunpack.c.l.b16 %v322
    %v362 = vunpack.c.l.b16 %v323
    %v363 = vunpack.c.l.b16 %v324
    %v364 = vunpack.c.l.b16 %v325
    %v365 = vunpack.c.l.b16 %v326
    %v366 = vunpack.c.l.b16 %v327
    %v367 = vpack.c.b16 %v352, %v351
    %v368 = vpack.c.b16 %v354, %v353
    %v369 = vpack.c.b16 %v356, %v355
    %v370 = vpack.c.b16 %v358, %v357
    %v371 = vpack.c.b16 %v360, %v359
    %v372 = vpack.c.b16 %v362, %v361
    %v373 = vpack.c.b16 %v364, %v363
    %v374 = vpack.c.b16 %v366, %v365
    %383 = vmatprep.subr.bf16.mxu0 0
    %384 = vmatpush1.bf16.msra.mxu0 %v367
    %385 = vmatprep.subr.bf16.mxu0 0
    %386 = vmatpush1.bf16.msra.mxu0 %v368
    %387 = vmatprep.subr.bf16.mxu0 0
    %388 = vmatpush1.bf16.msra.mxu0 %v369
    %389 = vmatprep.subr.bf16.mxu0 0
    %390 = vmatpush1.bf16.msra.mxu0 %v370
    %391 = vmatprep.subr.bf16.mxu0 0
    %392 = vmatpush1.bf16.msra.mxu0 %v371
    %393 = vmatprep.subr.bf16.mxu0 0
    %394 = vmatpush1.bf16.msra.mxu0 %v372
    %395 = vmatprep.subr.bf16.mxu0 0
    %396 = vmatpush1.bf16.msra.mxu0 %v373
    %397 = vmatprep.subr.bf16.mxu0 0
    %398 = vmatpush1.bf16.msra.mxu0 %v374
    %399 = vmatprep.subr.bf16.mxu0 0
    %400 = vmatpush1.bf16.msra.mxu0 0
    %401 = vmatprep.subr.bf16.mxu0 0
    %402 = vmatpush1.bf16.msra.mxu0 0
    %403 = vmatprep.subr.bf16.mxu0 0
    %404 = vmatpush1.bf16.msra.mxu0 0
    %405 = vmatprep.subr.bf16.mxu0 0
    %406 = vmatpush1.bf16.msra.mxu0 0
    %407 = vmatprep.subr.bf16.mxu0 0
    %408 = vmatpush1.bf16.msra.mxu0 0
    %409 = vmatprep.subr.bf16.mxu0 0
    %410 = vmatpush1.bf16.msra.mxu0 0
    %411 = vmatprep.subr.bf16.mxu0 0
    %412 = vmatpush1.bf16.msra.mxu0 0
    %413 = vmatprep.subr.bf16.mxu0 0
    %414 = vmatpush1.bf16.msra.mxu0 0
    %415 = vmatprep.mubr.bf16.mxu0 0
    %416 = vmatmul.mubr.bf16.gmra.mrb[0].mxu0 %v311
    %v417 = vpop.f32.mrb[0].mxu0
    %v418 = vadd.f32 %v333, %v417
    %v419 = vpop.f32.mrb[0].mxu0
    %v420 = vpop.f32.mrb[0].mxu0
    %v421 = vadd.f32 %v333, %v420
    %v422 = vpop.f32.mrb[0].mxu0
    %423 = vdwg.mxu0
    %v424 = vmax.f32 %v418, 0.0
    %v425 = vmax.f32 %v421, 0.0
    %v426 = vpack.c.bf16 %v425, %v424
    %v427 = vld [vmem:[%s7] sm:$0xf]
    %v428 = vld [vmem:[%s7 + $0x4] sm:$0xf]
    %v429 = vld [vmem:[%s7 + $0x8] sm:$0xf]
    %v430 = vld [vmem:[%s7 + $0xc] sm:$0xf]
    %v431 = vld [vmem:[%s7 + $0x10] sm:$0xf]
    %v432 = vld [vmem:[%s7 + $0x14] sm:$0xf]
    %v433 = vld [vmem:[%s7 + $0x18] sm:$0xf]
    %v434 = vld [vmem:[%s7 + $0x1c] sm:$0xf]
    %v435 = vld [vmem:[%s7 + $0x20] sm:$0xf]
    %v436 = vld [vmem:[%s7 + $0x24] sm:$0xf]
    %v437 = vld [vmem:[%s7 + $0x28] sm:$0xf]
    %v438 = vld [vmem:[%s7 + $0x2c] sm:$0xf]
    %v439 = vld [vmem:[%s7 + $0x30] sm:$0xf]
    %v440 = vld [vmem:[%s7 + $0x34] sm:$0xf]
    %v441 = vld [vmem:[%s7 + $0x38] sm:$0xf]
    %v442 = vld [vmem:[%s7 + $0x3c] sm:$0xf]
    %v443 = vld [vmem:[%s8] sm:$0x1]
    %v445 = vlaneseq
    %v446 = vshrl.u32 %v445, 7
    %v447 = vsub.s32 0, %v446
    %v448 = vrot.slane %v443, %v447
    %v466 = vunpack.c.l.b16 %v427
    %v467 = vunpack.c.l.b16 %v428
    %v468 = vunpack.c.l.b16 %v429
    %v469 = vunpack.c.l.b16 %v430
    %v470 = vunpack.c.l.b16 %v431
    %v471 = vunpack.c.l.b16 %v432
    %v472 = vunpack.c.l.b16 %v433
    %v473 = vunpack.c.l.b16 %v434
    %v474 = vunpack.c.l.b16 %v435
    %v475 = vunpack.c.l.b16 %v436
    %v476 = vunpack.c.l.b16 %v437
    %v477 = vunpack.c.l.b16 %v438
    %v478 = vunpack.c.l.b16 %v439
    %v479 = vunpack.c.l.b16 %v440
    %v480 = vunpack.c.l.b16 %v441
    %v481 = vunpack.c.l.b16 %v442
    %v482 = vpack.c.b16 %v467, %v466
    %v483 = vpack.c.b16 %v469, %v468
    %v484 = vpack.c.b16 %v471, %v470
    %v485 = vpack.c.b16 %v473, %v472
    %v486 = vpack.c.b16 %v475, %v474
    %v487 = vpack.c.b16 %v477, %v476
    %v488 = vpack.c.b16 %v479, %v478
    %v489 = vpack.c.b16 %v481, %v480
    %498 = vmatprep.subr.bf16.mxu0 0
    %499 = vmatpush1.bf16.msra.mxu0 %v482
    %500 = vmatprep.subr.bf16.mxu0 0
    %501 = vmatpush1.bf16.msra.mxu0 %v483
    %502 = vmatprep.subr.bf16.mxu0 0
    %503 = vmatpush1.bf16.msra.mxu0 %v484
    %504 = vmatprep.subr.bf16.mxu0 0
    %505 = vmatpush1.bf16.msra.mxu0 %v485
    %506 = vmatprep.subr.bf16.mxu0 0
    %507 = vmatpush1.bf16.msra.mxu0 %v486
    %508 = vmatprep.subr.bf16.mxu0 0
    %509 = vmatpush1.bf16.msra.mxu0 %v487
    %510 = vmatprep.subr.bf16.mxu0 0
    %511 = vmatpush1.bf16.msra.mxu0 %v488
    %512 = vmatprep.subr.bf16.mxu0 0
    %513 = vmatpush1.bf16.msra.mxu0 %v489
    %514 = vmatprep.subr.bf16.mxu0 0
    %515 = vmatpush1.bf16.msra.mxu0 0
    %516 = vmatprep.subr.bf16.mxu0 0
    %517 = vmatpush1.bf16.msra.mxu0 0
    %518 = vmatprep.subr.bf16.mxu0 0
    %519 = vmatpush1.bf16.msra.mxu0 0
    %520 = vmatprep.subr.bf16.mxu0 0
    %521 = vmatpush1.bf16.msra.mxu0 0
    %522 = vmatprep.subr.bf16.mxu0 0
    %523 = vmatpush1.bf16.msra.mxu0 0
    %524 = vmatprep.subr.bf16.mxu0 0
    %525 = vmatpush1.bf16.msra.mxu0 0
    %526 = vmatprep.subr.bf16.mxu0 0
    %527 = vmatpush1.bf16.msra.mxu0 0
    %528 = vmatprep.subr.bf16.mxu0 0
    %529 = vmatpush1.bf16.msra.mxu0 0
    %530 = vmatprep.mubr.bf16.mxu0 0
    %531 = vmatmul.mubr.bf16.gmra.mrb[0].mxu0 %v426
    %v532 = vpop.f32.mrb[0].mxu0
    %v533 = vadd.f32 %v448, %v532
    %v534 = vpop.f32.mrb[0].mxu0
    %v535 = vpop.f32.mrb[0].mxu0
    %v536 = vadd.f32 %v448, %v535
    %v537 = vpop.f32.mrb[0].mxu0
    %538 = vdwg.mxu0
    %539 = vst [vmem:[%s9] sm:$0xff] %v533
    %540 = vst [vmem:[%s9 + $0x8] sm:$0xff] %v536
    // Predicated region
    $region50: #{relu_net_forward.1} parent=1 // pred_check
      _
    $region51: #{relu_net_forward.1} parent=1 // pred_check_branch
      %542 = sbr.rel (0) target = $region53
    $region52: #{relu_net_forward.1} parent=1 // pred_region
      _
    $region53: #{relu_net_forward.1} parent=1 // pred_fallthru
      _
    // Predicated region
    $region54: #{relu_net_forward.1} parent=1 // pred_check
      _
    $region55: #{relu_net_forward.1} parent=1 // pred_check_branch
      %544 = sbr.rel (0) target = $region57
    $region56: #{relu_net_forward.1} parent=1 // pred_region
      _
    $region57: #{relu_net_forward.1} parent=1 // pred_fallthru
      _
    %545 = vsyncpa [#allocation3], 1
    %546 = vsyncpa [#allocation5], 1

</llo_original>
